<compile_context>
chip_gen: v6e
topology: v6e:2x2x1
jax: 0.10.0
libtpu: 0.0.40
codegen_flags: <defaults>
</compile_context>

<pallas_src>
import functools
import math

import jax
import jax.numpy as jnp
from jax import lax
from jax.experimental import pallas as pl
from jax.experimental.pallas import tpu as pltpu


def _round_up(x, m):
    return ((x + m - 1) // m) * m


def _sublane_min(dtype):
    return {4: 8, 2: 16, 1: 32}.get(jnp.dtype(dtype).itemsize, 8)


def _device_kind():
    try:
        return jax.devices()[0].device_kind.lower()
    except Exception:
        return ""


def _vmem_limit_bytes():
    # Generation-aware cap: ~48 MiB on 128-MiB-VMEM chips (v5e/v6e), ~40 MiB on
    # v7x (64 MiB physical) so compiler scratch still has headroom.
    try:
        cap = int(pltpu.get_tpu_info().vmem_capacity_bytes)
    except Exception:
        cap = 128 * 1024 * 1024
    return int(min(48 * 1024 * 1024, (cap * 5) // 8))


# --------------------------------------------------------------------------
# Kernel
# --------------------------------------------------------------------------
def _geglu_kernel(x_ref, wv_ref, wg_ref, bv_ref, bg_ref, o_ref, acc_v, acc_g):
    # x_ref: (tm, tk); wv_ref/wg_ref: (tk, tn); bv_ref/bg_ref: (1, tn) f32
    # o_ref: (tm, tn); acc_v/acc_g: (tm, tn) f32, resident across the K axis.
    k = pl.program_id(2)

    @pl.when(k == 0)
    def _():
        acc_v[...] = jnp.zeros_like(acc_v)
        acc_g[...] = jnp.zeros_like(acc_g)

    x = x_ref[...]
    acc_v[...] += jnp.dot(x, wv_ref[...], preferred_element_type=jnp.float32)
    acc_g[...] += jnp.dot(x, wg_ref[...], preferred_element_type=jnp.float32)

    @pl.when(k == pl.num_programs(2) - 1)
    def _():
        val = acc_v[...] + bv_ref[...]
        gate = acc_g[...] + bg_ref[...]
        # Exact (erf-based) GELU -- matches torch.nn.functional.gelu default.
        gelu_gate = 0.5 * gate * (1.0 + lax.erf(gate * (1.0 / math.sqrt(2.0))))
        o_ref[...] = (val * gelu_gate).astype(o_ref.dtype)


# --------------------------------------------------------------------------
# One-time parameter prep (hoisted out of the per-call forward path)
# --------------------------------------------------------------------------
def pack_geglu_params(weight, bias, *, tn, tk, compute_dtype=None):
    """weight: (dim_in, 2*dim_out) (i.e. torch proj.weight.T), bias: (2*dim_out,).

    Returns zero-padded per-half weight slabs (k_pad, n_pad) and f32 bias rows
    (1, n_pad).  Call once and reuse: the forward never repacks parameters.
    """
    dim_in, two_n = weight.shape
    dim_out = two_n // 2
    k_pad = _round_up(dim_in, tk)
    n_pad = _round_up(dim_out, tn)

    if compute_dtype is not None:
        weight = weight.astype(compute_dtype)

    w_val = jnp.pad(weight[:, :dim_out], ((0, k_pad - dim_in), (0, n_pad - dim_out)))
    w_gate = jnp.pad(weight[:, dim_out:], ((0, k_pad - dim_in), (0, n_pad - dim_out)))

    bias_f32 = bias.astype(jnp.float32)
    b_val = jnp.pad(bias_f32[:dim_out], (0, n_pad - dim_out)).reshape(1, n_pad)
    b_gate = jnp.pad(bias_f32[dim_out:], (0, n_pad - dim_out)).reshape(1, n_pad)
    return w_val, w_gate, b_val, b_gate


# --------------------------------------------------------------------------
# Jitted forward (params already packed; only x is padded per call)
# --------------------------------------------------------------------------
@functools.partial(
    jax.jit,
    static_argnames=("dim_out", "tm_base", "tn", "tk", "vmem_limit", "weight_buffers"),
)
def _geglu_forward(x, w_val, w_gate, b_val, b_gate, *, dim_out, tm_base, tn, tk,
                   vmem_limit, weight_buffers):
    lead_shape = x.shape[:-1]
    dim_in = x.shape[-1]
    out_dtype = x.dtype
    compute_dtype = w_val.dtype
    k_pad, n_pad = w_val.shape

    m = math.prod(lead_shape) if lead_shape else 1
    sub = max(_sublane_min(compute_dtype), _sublane_min(out_dtype))
    tm = min(tm_base, _round_up(m, sub))
    tm = _round_up(tm, sub)
    m_pad = _round_up(m, tm)

    x2d = x.reshape(m, dim_in).astype(compute_dtype)
    x2d = jnp.pad(x2d, ((0, m_pad - m), (0, k_pad - dim_in)))

    grid = (m_pad // tm, n_pad // tn, k_pad // tk)

    w_spec_kwargs = {}
    if weight_buffers is not None:
        # Deeper pipelining of the weight stream (only useful if the first
        # weight DMA per (m, n) block is exposed, e.g. very short K loops).
        w_spec_kwargs = dict(pipeline_mode=pl.Buffered(weight_buffers))

    out2d = pl.pallas_call(
        _geglu_kernel,
        out_shape=jax.ShapeDtypeStruct((m_pad, n_pad), out_dtype),
        grid_spec=pltpu.PrefetchScalarGridSpec(
            num_scalar_prefetch=0,
            grid=grid,
            in_specs=[
                pl.BlockSpec((tm, tk), lambda i, n, k: (i, k)),
                pl.BlockSpec((tk, tn), lambda i, n, k: (k, n), **w_spec_kwargs),
                pl.BlockSpec((tk, tn), lambda i, n, k: (k, n), **w_spec_kwargs),
                pl.BlockSpec((1, tn), lambda i, n, k: (0, n)),
                pl.BlockSpec((1, tn), lambda i, n, k: (0, n)),
            ],
            out_specs=pl.BlockSpec((tm, tn), lambda i, n, k: (i, n)),
            scratch_shapes=[
                pltpu.VMEM((tm, tn), jnp.float32),
                pltpu.VMEM((tm, tn), jnp.float32),
            ],
        ),
        compiler_params=pltpu.CompilerParams(
            dimension_semantics=("parallel", "parallel", "arbitrary"),
            vmem_limit_bytes=vmem_limit,
        ),
    )(x2d, w_val, w_gate, b_val, b_gate)

    out2d = out2d[:m, :dim_out]
    return out2d.reshape(*lead_shape, dim_out)


# --------------------------------------------------------------------------
# Public API
# --------------------------------------------------------------------------
def make_geglu(weight, bias, *, tm=None, tn=None, tk=None, compute_dtype=None,
               weight_buffers=None):
    """Build a GEGLU forward fn. Packs/pads the parameters ONCE (hoisted out of
    the per-call path) and returns `fn(x) -> (..., dim_out)`.

    weight: (dim_in, 2*dim_out)  (torch proj.weight.T), bias: (2*dim_out,)
    compute_dtype: e.g. jnp.bfloat16 for bf16 operands with f32 accumulation
                   (changes numerics slightly); None keeps input dtypes.
    """
    dim_in, two_n = weight.shape
    dim_out = two_n // 2
    kind = _device_kind()

    n128 = _round_up(dim_out, 128)
    k128 = _round_up(dim_in, 128)

    if tn is None:
        tn = min(512, n128)
        # Megacore (v7x): if N would be a single tile and there's room, split
        # it so grid_m==1 shapes still give the second TensorCore work.
        if tn == n128 and n128 >= 256:
            tn = _round_up(n128 // 2, 128)
    tn = min(_round_up(tn, 128), n128)

    if tk is None:
        tk = 1024 if dim_in >= 2048 else 512
    tk = min(_round_up(tk, 128), k128)

    if tm is None:
        # v6e ridge (~650 flop/byte) wants bigger M tiles; 512 elsewhere.
        tm = 1024 if "v6" in kind else 512

    w_val, w_gate, b_val, b_gate = pack_geglu_params(
        weight, bias, tn=tn, tk=tk, compute_dtype=compute_dtype)

    vmem_limit = _vmem_limit_bytes()

    def forward(x):
        return _geglu_forward(
            x, w_val, w_gate, b_val, b_gate,
            dim_out=dim_out, tm_base=tm, tn=tn, tk=tk,
            vmem_limit=vmem_limit, weight_buffers=weight_buffers)

    return forward


def geglu(x, weight, bias, **kwargs):
    """One-shot convenience wrapper (packs params every call; prefer make_geglu)."""
    return make_geglu(weight, bias, **kwargs)(x)


def _geglu_ref(x, weight, bias):
    proj = jnp.dot(x, weight) + bias
    dim_out = weight.shape[-1] // 2
    val, gate = proj[..., :dim_out], proj[..., dim_out:]
    return val * jax.nn.gelu(gate, approximate=False)


if __name__ == "__main__":
    key = jax.random.PRNGKey(0)

    # --- primary test: small shapes consistent with the module -------------
    batch, seq, dim_in, dim_out = 2, 8, 32, 32
    kx, kw, kb, k2x, k2w, k2b = jax.random.split(key, 6)

    x = jax.random.normal(kx, (batch, seq, dim_in), dtype=jnp.float32)
    bound = 1.0 / math.sqrt(dim_in)
    weight = jax.random.uniform(
        kw, (dim_in, 2 * dim_out), minval=-bound, maxval=bound, dtype=jnp.float32
    )
    bias = jax.random.uniform(
        kb, (2 * dim_out,), minval=-bound, maxval=bound, dtype=jnp.float32
    )

    geglu_fn = make_geglu(weight, bias)                 # params packed once
    out = jax.block_until_ready(geglu_fn(x))
    ref = _geglu_ref(x, weight, bias)
    assert out.shape == (batch, seq, dim_out)
    assert jnp.allclose(out, ref, atol=1e-5, rtol=1e-5), "mismatch vs. reference"

    # --- secondary test: non-128-multiple dims, multi-tile M/N/K grid ------
    b2, s2, din2, dout2 = 2, 17, 300, 136
    x2 = jax.random.normal(k2x, (b2, s2, din2), dtype=jnp.float32)
    bound2 = 1.0 / math.sqrt(din2)
    w2 = jax.random.uniform(
        k2w, (din2, 2 * dout2), minval=-bound2, maxval=bound2, dtype=jnp.float32
    )
    bb2 = jax.random.uniform(
        k2b, (2 * dout2,), minval=-bound2, maxval=bound2, dtype=jnp.float32
    )
    geglu_fn2 = make_geglu(w2, bb2, tm=16, tn=128, tk=128)
    out2 = jax.block_until_ready(geglu_fn2(x2))
    ref2 = _geglu_ref(x2, w2, bb2)
    assert out2.shape == (b2, s2, dout2)
    assert jnp.allclose(out2, ref2, atol=1e-4, rtol=1e-4), "padded-case mismatch"

    # --- optional bf16-operand path (f32 accumulation, f32 output) ---------
    geglu_bf16 = make_geglu(weight, bias, compute_dtype=jnp.bfloat16)
    out3 = jax.block_until_ready(geglu_bf16(x))
    assert out3.dtype == x.dtype
    assert jnp.allclose(out3, ref, atol=3e-2, rtol=3e-2), "bf16-path mismatch"

    print("KERNEL_OK")
</pallas_src>

<mosaic_0001>
module attributes {stable_mosaic.version = 11 : i64} {
  func.func @_geglu_kernel(%arg0: i32, %arg1: i32, %arg2: i32, %arg3: memref<16x128xf32, #tpu.memory_space<vmem>>, %arg4: memref<128x128xf32, #tpu.memory_space<vmem>>, %arg5: memref<128x128xf32, #tpu.memory_space<vmem>>, %arg6: memref<1x128xf32, #tpu.memory_space<vmem>>, %arg7: memref<1x128xf32, #tpu.memory_space<vmem>>, %arg8: memref<16x128xf32, #tpu.memory_space<vmem>>, %arg9: memref<16x128xf32, #tpu.memory_space<vmem>>, %arg10: memref<16x128xf32, #tpu.memory_space<vmem>>) attributes {dimension_semantics = [#tpu.dimension_semantics<parallel>, #tpu.dimension_semantics<parallel>, #tpu.dimension_semantics<arbitrary>], iteration_bounds = array<i64: 1, 1, 1>, scalar_prefetch = 0 : i64, scratch_operands = 2 : i64, tpu.core_type = #tpu.core_type<tc>, window_params = [{transform_indices = @transform_0, window_bounds = array<i64: 16, 128>}, {transform_indices = @transform_1, window_bounds = array<i64: 128, 128>}, {transform_indices = @transform_2, window_bounds = array<i64: 128, 128>}, {transform_indices = @transform_3, window_bounds = array<i64: 1, 128>}, {transform_indices = @transform_4, window_bounds = array<i64: 1, 128>}, {transform_indices = @transform_5, window_bounds = array<i64: 16, 128>}]} {
    %c0_i32 = arith.constant 0 : i32
    %0 = arith.cmpi eq, %arg2, %c0_i32 : i32
    %1 = arith.extui %0 : i1 to i32
    %c0_i32_0 = arith.constant 0 : i32
    %2 = arith.cmpi ne, %1, %c0_i32_0 : i32
    scf.if %2 {
      %cst_17 = arith.constant 0.000000e+00 : f32
      %17 = vector.broadcast %cst_17 : f32 to vector<16x128xf32>
      %c0_18 = arith.constant 0 : index
      %c0_19 = arith.constant 0 : index
      %18 = vector.load %arg9[%c0_18, %c0_19] : memref<16x128xf32, #tpu.memory_space<vmem>>, vector<16x128xf32>
      tpu.vector_store %arg9[%c0_18, %c0_19], %17 {strides = array<i32>} : memref<16x128xf32, #tpu.memory_space<vmem>>, vector<16x128xf32>,
      %cst_20 = arith.constant 0.000000e+00 : f32
      %19 = vector.broadcast %cst_20 : f32 to vector<16x128xf32>
      %c0_21 = arith.constant 0 : index
      %c0_22 = arith.constant 0 : index
      %20 = vector.load %arg10[%c0_21, %c0_22] : memref<16x128xf32, #tpu.memory_space<vmem>>, vector<16x128xf32>
      tpu.vector_store %arg10[%c0_21, %c0_22], %19 {strides = array<i32>} : memref<16x128xf32, #tpu.memory_space<vmem>>, vector<16x128xf32>,
    } else {
    }
    %c0 = arith.constant 0 : index
    %c0_1 = arith.constant 0 : index
    %3 = vector.load %arg3[%c0, %c0_1] : memref<16x128xf32, #tpu.memory_space<vmem>>, vector<16x128xf32>
    %c0_2 = arith.constant 0 : index
    %c0_3 = arith.constant 0 : index
    %4 = vector.load %arg9[%c0_2, %c0_3] : memref<16x128xf32, #tpu.memory_space<vmem>>, vector<16x128xf32>
    %c0_4 = arith.constant 0 : index
    %c0_5 = arith.constant 0 : index
    %5 = vector.load %arg4[%c0_4, %c0_5] : memref<128x128xf32, #tpu.memory_space<vmem>>, vector<128x128xf32>
    %cst = arith.constant dense<0.000000e+00> : vector<16x128xf32>
    %6 = tpu.matmul %3, %5, %cst {dimension_numbers = #tpu.dot_dimension_numbers<[1], [0], [0], [1], [0, 0, 1, 1], [], []>} : vector<16x128xf32>, vector<128x128xf32>, vector<16x128xf32> -> vector<16x128xf32>
    %7 = arith.addf %4, %6 : vector<16x128xf32>
    %c0_6 = arith.constant 0 : index
    %c0_7 = arith.constant 0 : index
    %8 = vector.load %arg9[%c0_6, %c0_7] : memref<16x128xf32, #tpu.memory_space<vmem>>, vector<16x128xf32>
    tpu.vector_store %arg9[%c0_6, %c0_7], %7 {strides = array<i32>} : memref<16x128xf32, #tpu.memory_space<vmem>>, vector<16x128xf32>,
    %c0_8 = arith.constant 0 : index
    %c0_9 = arith.constant 0 : index
    %9 = vector.load %arg10[%c0_8, %c0_9] : memref<16x128xf32, #tpu.memory_space<vmem>>, vector<16x128xf32>
    %c0_10 = arith.constant 0 : index
    %c0_11 = arith.constant 0 : index
    %10 = vector.load %arg5[%c0_10, %c0_11] : memref<128x128xf32, #tpu.memory_space<vmem>>, vector<128x128xf32>
    %cst_12 = arith.constant dense<0.000000e+00> : vector<16x128xf32>
    %11 = tpu.matmul %3, %10, %cst_12 {dimension_numbers = #tpu.dot_dimension_numbers<[1], [0], [0], [1], [0, 0, 1, 1], [], []>} : vector<16x128xf32>, vector<128x128xf32>, vector<16x128xf32> -> vector<16x128xf32>
    %12 = arith.addf %9, %11 : vector<16x128xf32>
    %c0_13 = arith.constant 0 : index
    %c0_14 = arith.constant 0 : index
    %13 = vector.load %arg10[%c0_13, %c0_14] : memref<16x128xf32, #tpu.memory_space<vmem>>, vector<16x128xf32>
    tpu.vector_store %arg10[%c0_13, %c0_14], %12 {strides = array<i32>} : memref<16x128xf32, #tpu.memory_space<vmem>>, vector<16x128xf32>,
    %c0_i32_15 = arith.constant 0 : i32
    %14 = arith.cmpi eq, %arg2, %c0_i32_15 : i32
    %15 = arith.extui %14 : i1 to i32
    %c0_i32_16 = arith.constant 0 : i32
    %16 = arith.cmpi ne, %15, %c0_i32_16 : i32
    scf.if %16 {
      %c0_17 = arith.constant 0 : index
      %c0_18 = arith.constant 0 : index
      %17 = vector.load %arg9[%c0_17, %c0_18] : memref<16x128xf32, #tpu.memory_space<vmem>>, vector<16x128xf32>
      %c0_19 = arith.constant 0 : index
      %c0_20 = arith.constant 0 : index
      %18 = vector.load %arg6[%c0_19, %c0_20] : memref<1x128xf32, #tpu.memory_space<vmem>>, vector<1x128xf32>
      %19 = vector.broadcast %18 : vector<1x128xf32> to vector<16x128xf32>
      %20 = arith.addf %17, %19 : vector<16x128xf32>
      %c0_21 = arith.constant 0 : index
      %c0_22 = arith.constant 0 : index
      %21 = vector.load %arg10[%c0_21, %c0_22] : memref<16x128xf32, #tpu.memory_space<vmem>>, vector<16x128xf32>
      %c0_23 = arith.constant 0 : index
      %c0_24 = arith.constant 0 : index
      %22 = vector.load %arg7[%c0_23, %c0_24] : memref<1x128xf32, #tpu.memory_space<vmem>>, vector<1x128xf32>
      %23 = vector.broadcast %22 : vector<1x128xf32> to vector<16x128xf32>
      %24 = arith.addf %21, %23 : vector<16x128xf32>
      %cst_25 = arith.constant 5.000000e-01 : f32
      %25 = vector.broadcast %cst_25 : f32 to vector<16x128xf32>
      %26 = arith.mulf %25, %24 : vector<16x128xf32>
      %cst_26 = arith.constant 0.707106769 : f32
      %27 = vector.broadcast %cst_26 : f32 to vector<16x128xf32>
      %28 = arith.mulf %24, %27 : vector<16x128xf32>
      %29 = math.erf %28 : vector<16x128xf32>
      %cst_27 = arith.constant 1.000000e+00 : f32
      %30 = vector.broadcast %cst_27 : f32 to vector<16x128xf32>
      %31 = arith.addf %30, %29 : vector<16x128xf32>
      %32 = arith.mulf %26, %31 : vector<16x128xf32>
      %33 = arith.mulf %20, %32 : vector<16x128xf32>
      %c0_28 = arith.constant 0 : index
      %c0_29 = arith.constant 0 : index
      %34 = vector.load %arg8[%c0_28, %c0_29] : memref<16x128xf32, #tpu.memory_space<vmem>>, vector<16x128xf32>
      tpu.vector_store %arg8[%c0_28, %c0_29], %33 {strides = array<i32>} : memref<16x128xf32, #tpu.memory_space<vmem>>, vector<16x128xf32>,
    } else {
    }
    return
  }
  func.func @transform_0(%arg0: i32, %arg1: i32, %arg2: i32) -> (i32, i32) {
    %c0_i32 = arith.constant 0 : i32
    return %arg0, %arg2 : i32, i32
  }
  func.func @transform_1(%arg0: i32, %arg1: i32, %arg2: i32) -> (i32, i32) {
    %c0_i32 = arith.constant 0 : i32
    return %arg2, %arg1 : i32, i32
  }
  func.func @transform_2(%arg0: i32, %arg1: i32, %arg2: i32) -> (i32, i32) {
    %c0_i32 = arith.constant 0 : i32
    return %arg2, %arg1 : i32, i32
  }
  func.func @transform_3(%arg0: i32, %arg1: i32, %arg2: i32) -> (i32, i32) {
    %c0_i32 = arith.constant 0 : i32
    %c0_i32_0 = arith.constant 0 : i32
    return %c0_i32, %arg1 : i32, i32
  }
  func.func @transform_4(%arg0: i32, %arg1: i32, %arg2: i32) -> (i32, i32) {
    %c0_i32 = arith.constant 0 : i32
    %c0_i32_0 = arith.constant 0 : i32
    return %c0_i32, %arg1 : i32, i32
  }
  func.func @transform_5(%arg0: i32, %arg1: i32, %arg2: i32) -> (i32, i32) {
    %c0_i32 = arith.constant 0 : i32
    return %arg0, %arg1 : i32, i32
  }
}

</mosaic_0001>

<llo_original>
// kernel: _geglu_forward.1
$region0: #{_geglu_forward.1}
  #allocation0 [shape = 'u32[]', space=smem, size = 0x4, offset = 0x4, fixed_abs, tag = 'smem constant byte address 0x4 - core index']
  #allocation1 [shape = 'u32[144,128]{1,0:T(1,128)}', space=vmem, size = 0x12000, scoped, tag = 'internal scratch']
  #allocation2 [shape = 'f32[16,128]{1,0:T(8,128)}', space=vmem, size = 0x2000, scoped, tag = 'scratch operand']
  #allocation3 [shape = 'f32[16,128]{1,0:T(8,128)}', space=vmem, size = 0x2000, scoped, tag = 'scratch operand']
  %s0 = inlined_call_operand.vmem [shape: f32[16,128], index: 0, kind: input, shape index: {}]
  %s1 = inlined_call_operand.hbm [shape: f32[128,128], index: 1, kind: input, shape index: {}]
  %s2 = inlined_call_operand.hbm [shape: f32[128,128], index: 2, kind: input, shape index: {}]
  %s3 = inlined_call_operand.vmem [shape: f32[1,128], index: 3, kind: input, shape index: {}]
  %s4 = inlined_call_operand.vmem [shape: f32[1,128], index: 4, kind: input, shape index: {}]
  %s5 = inlined_call_operand.vmem [shape: f32[16,128], index: 5, kind: output, shape index: {}]
  %s6 = sld [smem:[#allocation0]]
  $region46: #{_geglu_forward.1} parent=0
    _
  %s8 = ssub.s32 1, %s6
  %s9 = scalar_select 0, %s8, %s6
  $region1: #{_geglu_forward.1} parent=0
    #allocation4 [shape = 'u8[65536]{0}', space=vmem, size = 0x10000, scoped, tag = 'input window, operand 1, single buffered']
    #allocation5 [shape = 's32[1]{0}', space=sflag, size = 0x4, scoped, tag = 'scoped memory for _geglu_forward.1']
    #allocation6 [shape = 'u8[65536]{0}', space=vmem, size = 0x10000, scoped, tag = 'input window, operand 2, single buffered']
    #allocation7 [shape = 's32[1]{0}', space=sflag, size = 0x4, scoped, tag = 'scoped memory for _geglu_forward.1']
    %10 = vsyncpa [#allocation5], 0
    %11 = vsyncpa [#allocation7], 0
    // Predicated region
    $region2: #{_geglu_forward.1} parent=1 // pred_check
      _
    $region3: #{_geglu_forward.1} parent=1 // pred_check_branch
      %13 = sbr.rel (0) target = $region5
    $region4: #{_geglu_forward.1} parent=1 // pred_region
      _
    $region5: #{_geglu_forward.1} parent=1 // pred_fallthru
      _
    // Predicated region
    $region6: #{_geglu_forward.1} parent=1 // pred_check
      _
    $region7: #{_geglu_forward.1} parent=1 // pred_check_branch
      %15 = sbr.rel (0) target = $region9
    $region8: #{_geglu_forward.1} parent=1 // pred_region
      %s17 = ssub.s32 2048, 2048
      %18 = vsyncadd [#allocation5], %s17
      %s19 = sshll.u32 [#allocation4], 4
      %s20 = int_to_ptr.vmem [resolvable:$true] %s19
      %25 = dma.hbm_to_vmem [thread:$0]  %s1, 2048, %s20, [#allocation5], 128, 128, 8
    $region9: #{_geglu_forward.1} parent=1 // pred_fallthru
      _
    // Predicated region
    $region10: #{_geglu_forward.1} parent=1 // pred_check
      _
    $region11: #{_geglu_forward.1} parent=1 // pred_check_branch
      %27 = sbr.rel (0) target = $region13
    $region12: #{_geglu_forward.1} parent=1 // pred_region
      %s29 = ssub.s32 2048, 2048
      %30 = vsyncadd [#allocation7], %s29
      %s31 = sshll.u32 [#allocation6], 4
      %s32 = int_to_ptr.vmem [resolvable:$true] %s31
      %37 = dma.hbm_to_vmem [thread:$0]  %s2, 2048, %s32, [#allocation7], 128, 128, 8
    $region13: #{_geglu_forward.1} parent=1 // pred_fallthru
      _
    // Predicated region
    $region14: #{_geglu_forward.1} parent=1 // pred_check
      _
    $region15: #{_geglu_forward.1} parent=1 // pred_check_branch
      %39 = sbr.rel (0) target = $region17
    $region16: #{_geglu_forward.1} parent=1 // pred_region
      _
    $region17: #{_geglu_forward.1} parent=1 // pred_fallthru
      _
    // Predicated region
    $region18: #{_geglu_forward.1} parent=1 // pred_check
      _
    $region19: #{_geglu_forward.1} parent=1 // pred_check_branch
      %41 = sbr.rel (0) target = $region21
    $region20: #{_geglu_forward.1} parent=1 // pred_region
      _
    $region21: #{_geglu_forward.1} parent=1 // pred_fallthru
      _
    // Predicated region
    $region22: #{_geglu_forward.1} parent=1 // pred_check
      _
    $region23: #{_geglu_forward.1} parent=1 // pred_check_branch
      %43 = sbr.rel (0) target = $region25
    $region24: #{_geglu_forward.1} parent=1 // pred_region
      %44 = dma.done [#allocation5], 2048
    $region25: #{_geglu_forward.1} parent=1 // pred_fallthru
      _
    // Predicated region
    $region26: #{_geglu_forward.1} parent=1 // pred_check
      _
    $region27: #{_geglu_forward.1} parent=1 // pred_check_branch
      %46 = sbr.rel (0) target = $region29
    $region28: #{_geglu_forward.1} parent=1 // pred_region
      %47 = dma.done [#allocation7], 2048
    $region29: #{_geglu_forward.1} parent=1 // pred_fallthru
      _
    %p48 = scmp.eq.s32.totalorder 0, 0
    // Predicated region
    $region30: #{_geglu_forward.1} parent=1 // pred_check
      %p49 = pneg %p48
    $region31: #{_geglu_forward.1} parent=1 // pred_check_branch
      %51 = sbr.rel (%p49) target = $region33
    $region32: #{_geglu_forward.1} parent=1 // pred_region
      %52 = vst [vmem:[#allocation2] sm:$0xff] 0.0
      %53 = vst [vmem:[#allocation2 + $0x8] sm:$0xff] 0.0
      %54 = vst [vmem:[#allocation3] sm:$0xff] 0.0
      %55 = vst [vmem:[#allocation3 + $0x8] sm:$0xff] 0.0
    $region33: #{_geglu_forward.1} parent=1 // pred_fallthru
      _
    %v56 = vld [vmem:[%s0] sm:$0xff]
    %v57 = vld [vmem:[%s0 + $0x8] sm:$0xff]
    %v58 = vld [vmem:[#allocation2] sm:$0xff]
    %v59 = vld [vmem:[#allocation2 + $0x8] sm:$0xff]
    %v60 = vld [vmem:[#allocation4] sm:$0xff]
    %v61 = vld [vmem:[#allocation4 + $0x8] sm:$0xff]
    %v62 = vld [vmem:[#allocation4 + $0x10] sm:$0xff]
    %v63 = vld [vmem:[#allocation4 + $0x18] sm:$0xff]
    %v64 = vld [vmem:[#allocation4 + $0x20] sm:$0xff]
    %v65 = vld [vmem:[#allocation4 + $0x28] sm:$0xff]
    %v66 = vld [vmem:[#allocation4 + $0x30] sm:$0xff]
    %v67 = vld [vmem:[#allocation4 + $0x38] sm:$0xff]
    %v68 = vld [vmem:[#allocation4 + $0x40] sm:$0xff]
    %v69 = vld [vmem:[#allocation4 + $0x48] sm:$0xff]
    %v70 = vld [vmem:[#allocation4 + $0x50] sm:$0xff]
    %v71 = vld [vmem:[#allocation4 + $0x58] sm:$0xff]
    %v72 = vld [vmem:[#allocation4 + $0x60] sm:$0xff]
    %v73 = vld [vmem:[#allocation4 + $0x68] sm:$0xff]
    %v74 = vld [vmem:[#allocation4 + $0x70] sm:$0xff]
    %v75 = vld [vmem:[#allocation4 + $0x78] sm:$0xff]
    %76 = vmatprep.subr.mxu0 0.0
    %77 = vmatpush1.msra.mxu0 %v75
    %78 = vmatprep.subr.mxu0 0.0
    %79 = vmatpush1.msra.mxu0 %v74
    %80 = vmatprep.subr.mxu0 0.0
    %81 = vmatpush1.msra.mxu0 %v73
    %82 = vmatprep.subr.mxu0 0.0
    %83 = vmatpush1.msra.mxu0 %v72
    %84 = vmatprep.subr.mxu0 0.0
    %85 = vmatpush1.msra.mxu0 %v71
    %86 = vmatprep.subr.mxu0 0.0
    %87 = vmatpush1.msra.mxu0 %v70
    %88 = vmatprep.subr.mxu0 0.0
    %89 = vmatpush1.msra.mxu0 %v69
    %90 = vmatprep.subr.mxu0 0.0
    %91 = vmatpush1.msra.mxu0 %v68
    %92 = vmatprep.subr.mxu0 0.0
    %93 = vmatpush1.msra.mxu0 %v67
    %94 = vmatprep.subr.mxu0 0.0
    %95 = vmatpush1.msra.mxu0 %v66
    %96 = vmatprep.subr.mxu0 0.0
    %97 = vmatpush1.msra.mxu0 %v65
    %98 = vmatprep.subr.mxu0 0.0
    %99 = vmatpush1.msra.mxu0 %v64
    %100 = vmatprep.subr.mxu0 0.0
    %101 = vmatpush1.msra.mxu0 %v63
    %102 = vmatprep.subr.mxu0 0.0
    %103 = vmatpush1.msra.mxu0 %v62
    %104 = vmatprep.subr.mxu0 0.0
    %105 = vmatpush1.msra.mxu0 %v61
    %106 = vmatprep.subr.mxu0 0.0
    %107 = vmatpush1.msra.mxu0 %v60
    %108 = vmatprep.subr.mxu0 0.0
    %109 = vmatpush2.msra.mxu0 0.0
    %110 = vmatprep.subr.mxu0 0.0
    %111 = vmatpush2.msra.mxu0 0.0
    %112 = vmatprep.subr.mxu0 0.0
    %113 = vmatpush2.msra.mxu0 0.0
    %114 = vmatprep.subr.mxu0 0.0
    %115 = vmatpush2.msra.mxu0 0.0
    %116 = vmatprep.subr.mxu0 0.0
    %117 = vmatpush2.msra.mxu0 0.0
    %118 = vmatprep.subr.mxu0 0.0
    %119 = vmatpush2.msra.mxu0 0.0
    %120 = vmatprep.subr.mxu0 0.0
    %121 = vmatpush2.msra.mxu0 0.0
    %122 = vmatprep.subr.mxu0 0.0
    %123 = vmatpush2.msra.mxu0 0.0
    %124 = vmatprep.subr.mxu0 0.0
    %125 = vmatpush2.msra.mxu0 0.0
    %126 = vmatprep.subr.mxu0 0.0
    %127 = vmatpush2.msra.mxu0 0.0
    %128 = vmatprep.subr.mxu0 0.0
    %129 = vmatpush2.msra.mxu0 0.0
    %130 = vmatprep.subr.mxu0 0.0
    %131 = vmatpush2.msra.mxu0 0.0
    %132 = vmatprep.subr.mxu0 0.0
    %133 = vmatpush2.msra.mxu0 0.0
    %134 = vmatprep.subr.mxu0 0.0
    %135 = vmatpush2.msra.mxu0 0.0
    %136 = vmatprep.subr.mxu0 0.0
    %137 = vmatpush2.msra.mxu0 0.0
    %138 = vmatprep.subr.mxu0 0.0
    %139 = vmatpush2.msra.mxu0 0.0
    %140 = vmatprep.mubr.f32.mxu0 0.0
    %141 = vmatmul.mubr.f32.gmra.mxu0 %v56
    %v142 = vpop.f32.mrf.mxu0
    %v143 = vadd.f32 0.0, %v142
    %v144 = vpop.f32.mrf.mxu0
    %145 = vmatprep.mubr.f32.mxu0 0.0
    %146 = vmatmul.mubr.f32.gmra.mxu0 %v57
    %v147 = vpop.f32.mrf.mxu0
    %v148 = vadd.f32 0.0, %v147
    %v149 = vpop.f32.mrf.mxu0
    %150 = vdwg.mxu0
    %v151 = vadd.f32 %v58, %v143
    %v152 = vadd.f32 %v59, %v148
    %153 = vst [vmem:[#allocation2] sm:$0xff] %v151
    %154 = vst [vmem:[#allocation2 + $0x8] sm:$0xff] %v152
    %v155 = vld [vmem:[#allocation3] sm:$0xff]
    %v156 = vld [vmem:[#allocation3 + $0x8] sm:$0xff]
    %v157 = vld [vmem:[#allocation6] sm:$0xff]
    %v158 = vld [vmem:[#allocation6 + $0x8] sm:$0xff]
    %v159 = vld [vmem:[#allocation6 + $0x10] sm:$0xff]
    %v160 = vld [vmem:[#allocation6 + $0x18] sm:$0xff]
    %v161 = vld [vmem:[#allocation6 + $0x20] sm:$0xff]
    %v162 = vld [vmem:[#allocation6 + $0x28] sm:$0xff]
    %v163 = vld [vmem:[#allocation6 + $0x30] sm:$0xff]
    %v164 = vld [vmem:[#allocation6 + $0x38] sm:$0xff]
    %v165 = vld [vmem:[#allocation6 + $0x40] sm:$0xff]
    %v166 = vld [vmem:[#allocation6 + $0x48] sm:$0xff]
    %v167 = vld [vmem:[#allocation6 + $0x50] sm:$0xff]
    %v168 = vld [vmem:[#allocation6 + $0x58] sm:$0xff]
    %v169 = vld [vmem:[#allocation6 + $0x60] sm:$0xff]
    %v170 = vld [vmem:[#allocation6 + $0x68] sm:$0xff]
    %v171 = vld [vmem:[#allocation6 + $0x70] sm:$0xff]
    %v172 = vld [vmem:[#allocation6 + $0x78] sm:$0xff]
    %173 = vmatprep.subr.mxu0 0.0
    %174 = vmatpush1.msra.mxu0 %v172
    %175 = vmatprep.subr.mxu0 0.0
    %176 = vmatpush1.msra.mxu0 %v171
    %177 = vmatprep.subr.mxu0 0.0
    %178 = vmatpush1.msra.mxu0 %v170
    %179 = vmatprep.subr.mxu0 0.0
    %180 = vmatpush1.msra.mxu0 %v169
    %181 = vmatprep.subr.mxu0 0.0
    %182 = vmatpush1.msra.mxu0 %v168
    %183 = vmatprep.subr.mxu0 0.0
    %184 = vmatpush1.msra.mxu0 %v167
    %185 = vmatprep.subr.mxu0 0.0
    %186 = vmatpush1.msra.mxu0 %v166
    %187 = vmatprep.subr.mxu0 0.0
    %188 = vmatpush1.msra.mxu0 %v165
    %189 = vmatprep.subr.mxu0 0.0
    %190 = vmatpush1.msra.mxu0 %v164
    %191 = vmatprep.subr.mxu0 0.0
    %192 = vmatpush1.msra.mxu0 %v163
    %193 = vmatprep.subr.mxu0 0.0
    %194 = vmatpush1.msra.mxu0 %v162
    %195 = vmatprep.subr.mxu0 0.0
    %196 = vmatpush1.msra.mxu0 %v161
    %197 = vmatprep.subr.mxu0 0.0
    %198 = vmatpush1.msra.mxu0 %v160
    %199 = vmatprep.subr.mxu0 0.0
    %200 = vmatpush1.msra.mxu0 %v159
    %201 = vmatprep.subr.mxu0 0.0
    %202 = vmatpush1.msra.mxu0 %v158
    %203 = vmatprep.subr.mxu0 0.0
    %204 = vmatpush1.msra.mxu0 %v157
    %205 = vmatprep.subr.mxu0 0.0
    %206 = vmatpush2.msra.mxu0 0.0
    %207 = vmatprep.subr.mxu0 0.0
    %208 = vmatpush2.msra.mxu0 0.0
    %209 = vmatprep.subr.mxu0 0.0
    %210 = vmatpush2.msra.mxu0 0.0
    %211 = vmatprep.subr.mxu0 0.0
    %212 = vmatpush2.msra.mxu0 0.0
    %213 = vmatprep.subr.mxu0 0.0
    %214 = vmatpush2.msra.mxu0 0.0
    %215 = vmatprep.subr.mxu0 0.0
    %216 = vmatpush2.msra.mxu0 0.0
    %217 = vmatprep.subr.mxu0 0.0
    %218 = vmatpush2.msra.mxu0 0.0
    %219 = vmatprep.subr.mxu0 0.0
    %220 = vmatpush2.msra.mxu0 0.0
    %221 = vmatprep.subr.mxu0 0.0
    %222 = vmatpush2.msra.mxu0 0.0
    %223 = vmatprep.subr.mxu0 0.0
    %224 = vmatpush2.msra.mxu0 0.0
    %225 = vmatprep.subr.mxu0 0.0
    %226 = vmatpush2.msra.mxu0 0.0
    %227 = vmatprep.subr.mxu0 0.0
    %228 = vmatpush2.msra.mxu0 0.0
    %229 = vmatprep.subr.mxu0 0.0
    %230 = vmatpush2.msra.mxu0 0.0
    %231 = vmatprep.subr.mxu0 0.0
    %232 = vmatpush2.msra.mxu0 0.0
    %233 = vmatprep.subr.mxu0 0.0
    %234 = vmatpush2.msra.mxu0 0.0
    %235 = vmatprep.subr.mxu0 0.0
    %236 = vmatpush2.msra.mxu0 0.0
    %237 = vmatprep.mubr.f32.mxu0 0.0
    %238 = vmatmul.mubr.f32.gmra.mxu0 %v56
    %v239 = vpop.f32.mrf.mxu0
    %v240 = vadd.f32 0.0, %v239
    %v241 = vpop.f32.mrf.mxu0
    %242 = vmatprep.mubr.f32.mxu0 0.0
    %243 = vmatmul.mubr.f32.gmra.mxu0 %v57
    %v244 = vpop.f32.mrf.mxu0
    %v245 = vadd.f32 0.0, %v244
    %v246 = vpop.f32.mrf.mxu0
    %247 = vdwg.mxu0
    %v248 = vadd.f32 %v155, %v240
    %v249 = vadd.f32 %v156, %v245
    %250 = vst [vmem:[#allocation3] sm:$0xff] %v248
    %251 = vst [vmem:[#allocation3 + $0x8] sm:$0xff] %v249
    // Predicated region
    $region34: #{_geglu_forward.1} parent=1 // pred_check
      %p252 = pneg %p48
    $region35: #{_geglu_forward.1} parent=1 // pred_check_branch
      %254 = sbr.rel (%p252) target = $region37
    $region36: #{_geglu_forward.1} parent=1 // pred_region
      %v255 = vld [vmem:[#allocation2] sm:$0xff]
      %v256 = vld [vmem:[#allocation2 + $0x8] sm:$0xff]
      %v257 = vld [vmem:[%s3] sm:$0x1]
      %v259 = vlaneseq
      %v260 = vshrl.u32 %v259, 7
      %v261 = vsub.s32 0, %v260
      %v262 = vrot.slane %v257, %v261
      %v264 = vadd.f32 %v255, %v262
      %v265 = vadd.f32 %v256, %v262
      %v266 = vld [vmem:[#allocation3] sm:$0xff]
      %v267 = vld [vmem:[#allocation3 + $0x8] sm:$0xff]
      %v268 = vld [vmem:[%s4] sm:$0x1]
      %v270 = vlaneseq
      %v271 = vshrl.u32 %v270, 7
      %v272 = vsub.s32 0, %v271
      %v273 = vrot.slane %v268, %v272
      %v275 = vadd.f32 %v266, %v273
      %v276 = vadd.f32 %v267, %v273
      %v277 = vmul.f32 %v275, 0.5
      %v278 = vmul.f32 %v276, 0.5
      %v279 = vmul.f32 %v275, 0.70710677
      %v280 = vmul.f32 %v276, 0.70710677
      %v281 = verf.f32.pop %v279
      %v282 = verf.f32.pop %v280
      %v283 = vadd.f32 %v281, 1.0
      %v284 = vadd.f32 %v282, 1.0
      %v285 = vmul.f32 %v277, %v283
      %v286 = vmul.f32 %v278, %v284
      %v287 = vmul.f32 %v264, %v285
      %v288 = vmul.f32 %v265, %v286
      %289 = vst [vmem:[%s5] sm:$0xff] %v287
      %290 = vst [vmem:[%s5 + $0x8] sm:$0xff] %v288
    $region37: #{_geglu_forward.1} parent=1 // pred_fallthru
      _
    // Predicated region
    $region38: #{_geglu_forward.1} parent=1 // pred_check
      _
    $region39: #{_geglu_forward.1} parent=1 // pred_check_branch
      %292 = sbr.rel (0) target = $region41
    $region40: #{_geglu_forward.1} parent=1 // pred_region
      _
    $region41: #{_geglu_forward.1} parent=1 // pred_fallthru
      _
    // Predicated region
    $region42: #{_geglu_forward.1} parent=1 // pred_check
      _
    $region43: #{_geglu_forward.1} parent=1 // pred_check_branch
      %294 = sbr.rel (0) target = $region45
    $region44: #{_geglu_forward.1} parent=1 // pred_region
      _
    $region45: #{_geglu_forward.1} parent=1 // pred_fallthru
      _
    %295 = vsyncpa [#allocation5], 1
    %296 = vsyncpa [#allocation7], 1

</llo_original>
